<compile_context>
chip_gen: v5e
topology: v5e:2x2
jax: 0.10.0
libtpu: 0.0.40
codegen_flags: <defaults>
</compile_context>

<pallas_src>
import functools

import jax
import jax.numpy as jnp
from jax.experimental import pallas as pl
from jax.experimental.pallas import tpu as pltpu


def _leaky(x, slope=0.2):
    # leaky_relu(negative_slope=0.2); for x<0, 0.2*x > x so max() is exact.
    return jnp.maximum(x, slope * x)


def _mod_conv_kernel(p_ref, w_ref, scale_ref, bias_ref, out_ref, *, activate):
    """Per-(sample, spatial-tile) fused im2col conv.

    p_ref:     (1, c*k*k, hw_t)   im2col patches of the style-modulated input
    w_ref:     (out_c, c*k*k)     shared base conv weight (grid-invariant)
    scale_ref: (1, out_c, 1)      per-sample demodulation scale (f32)
    bias_ref:  (1, out_c, 1)      per-sample style bias (f32)
    out_ref:   (1, out_c, hw_t)   lane-dense output
    """
    # Single MXU matmul: (out_c, c*k*k) @ (c*k*k, hw_t) -> f32 accumulate.
    acc = jnp.dot(w_ref[...], p_ref[0], preferred_element_type=jnp.float32)
    # Per-out-channel demod scale + style bias (lane broadcast over spatial axis).
    acc = acc * scale_ref[0] + bias_ref[0]
    if activate:
        acc = _leaky(acc)
    out_ref[0] = acc.astype(out_ref.dtype)


def _pick_hw_tile(hw, max_lanes=2048):
    """Largest multiple of 128 that divides hw (capped); else the full hw."""
    if hw % 128 != 0:
        return hw
    t = min(hw, max_lanes)
    t -= t % 128
    while hw % t != 0:
        t -= 128
    return t


def modulated_style_conv(x, style, params, *, kernel_size, demodulate=True,
                         activate=False, eps=1e-8, matmul_dtype=jnp.bfloat16):
    """Pallas implementation of ModulatedStyleConv.forward (upsample=downsample=False)."""
    n, c, h, w = x.shape
    k = kernel_size
    pad = k // 2
    hw = h * w
    ckk = c * k * k

    feat_ch = params["style_weight_w"].shape[1]
    s = style.reshape(n, -1).astype(jnp.float32)                 # (n, feat_ch)

    # --- style scale / bias for the whole batch (one XLA matmul each) ---------------
    wsw = params["style_weight_w"].reshape(-1, feat_ch).astype(jnp.float32)  # (c, feat)
    bsw = params["style_weight_b"].reshape(1, -1).astype(jnp.float32)        # (1, c)
    wsb = params["style_bias_w"].reshape(-1, feat_ch).astype(jnp.float32)    # (oc, feat)
    bsb = params["style_bias_b"].reshape(1, -1).astype(jnp.float32)          # (1, oc)
    base_w = params["weight"][0].astype(jnp.float32)                         # (oc,c,k,k)
    out_c = base_w.shape[0]

    sw = _leaky(s @ wsw.T + bsw)                                 # (n, c)
    sb = _leaky(s @ wsb.T + bsb)                                 # (n, out_c)

    # --- demodulation via the input-modulation equivalence --------------------------
    # sum_{c,ky,kx} (W[o,c,:,:] * sw[c])^2 == sw^2 @ (sum_kk W^2)[c,o]
    if demodulate:
        wsq = jnp.sum(base_w * base_w, axis=(2, 3))              # (out_c, c)
        demod = jax.lax.rsqrt((sw * sw) @ wsq.T + eps)           # (n, out_c)
    else:
        demod = jnp.ones((n, out_c), jnp.float32)

    # --- modulate input, pad, build lane-dense im2col slab (wrapper-side, XLA) ------
    x_mod = x.astype(jnp.float32) * sw[:, :, None, None]         # (n, c, h, w)
    x_pad = jnp.pad(x_mod, ((0, 0), (0, 0), (pad, pad), (pad, pad)))
    cols = []
    for dy in range(k):
        for dx in range(k):
            cols.append(x_pad[:, :, dy:dy + h, dx:dx + w].reshape(n, c, hw))
    # ordering along axis 1 is (ky, kx, c) to match the weight reshape below.
    patches = jnp.concatenate(cols, axis=1).astype(matmul_dtype)  # (n, k*k*c, h*w)

    # shared weight, flattened with matching (ky, kx, c) ordering
    w2 = jnp.transpose(base_w, (0, 2, 3, 1)).reshape(out_c, ckk).astype(matmul_dtype)

    scale = demod.reshape(n, out_c, 1)                           # f32
    bias = sb.reshape(n, out_c, 1)                               # f32

    kernel = functools.partial(_mod_conv_kernel, activate=activate)

    hw_t = _pick_hw_tile(hw)
    n_hw = hw // hw_t

    out_flat = pl.pallas_call(
        kernel,
        out_shape=jax.ShapeDtypeStruct((n, out_c, hw), x.dtype),
        grid_spec=pltpu.PrefetchScalarGridSpec(
            num_scalar_prefetch=0,
            grid=(n, n_hw),
            in_specs=[
                pl.BlockSpec((1, ckk, hw_t), lambda i, j: (i, 0, j)),
                pl.BlockSpec((out_c, ckk), lambda i, j: (0, 0)),     # grid-invariant
                pl.BlockSpec((1, out_c, 1), lambda i, j: (i, 0, 0)),
                pl.BlockSpec((1, out_c, 1), lambda i, j: (i, 0, 0)),
            ],
            out_specs=pl.BlockSpec((1, out_c, hw_t), lambda i, j: (i, 0, j)),
        ),
        compiler_params=pltpu.CompilerParams(
            dimension_semantics=("parallel", "parallel")),
    )(patches, w2, scale, bias)

    # NCHW reshape happens outside the kernel (keeps the kernel store lane-dense).
    return out_flat.reshape(n, out_c, h, w)


def modulated_style_conv_ref(x, style, params, *, kernel_size, demodulate=True,
                             activate=False, eps=1e-8):
    """Pure-JAX reference (mirrors the PyTorch forward) for verification."""
    n, c, h, w = x.shape
    k = kernel_size
    feat_ch = style.shape[1]
    s = style.reshape(n, feat_ch)

    wsw = params["style_weight_w"].reshape(-1, feat_ch)          # (c, feat_ch)
    style_w = _leaky(s @ wsw.T + params["style_weight_b"][None, :])     # (n, c)
    wsb = params["style_bias_w"].reshape(-1, feat_ch)            # (out_c, feat_ch)
    style_b = _leaky(s @ wsb.T + params["style_bias_b"][None, :])       # (n, out_c)

    weight = params["weight"] * style_w.reshape(n, 1, c, 1, 1)          # (n,out,c,k,k)
    if demodulate:
        demod = jax.lax.rsqrt(jnp.sum(weight ** 2, axis=(2, 3, 4)) + eps)
        weight = weight * demod.reshape(n, -1, 1, 1, 1)
    out_c = weight.shape[1]

    outs = []
    for i in range(n):
        o = jax.lax.conv_general_dilated(
            x[i:i + 1], weight[i], window_strides=(1, 1),
            padding=[(k // 2, k // 2), (k // 2, k // 2)],
            dimension_numbers=("NCHW", "OIHW", "NCHW"))
        outs.append(o)
    out = jnp.concatenate(outs, axis=0) + style_b.reshape(n, out_c, 1, 1)
    if activate:
        out = _leaky(out)
    return out


if __name__ == "__main__":
    # Small, forward-consistent shapes.
    n, input_nc, feat_ch, output_nc = 2, 4, 8, 8
    kernel_size, H, W = 3, 16, 16
    demodulate, activate = True, True

    key = jax.random.PRNGKey(0)
    k1, k2, k3, k4, k5, k6, k7 = jax.random.split(key, 7)

    params = {
        # nn.Conv2d(feat_ch, input_nc, 1) weights/bias
        "style_weight_w": jax.random.normal(k1, (input_nc, feat_ch, 1, 1), jnp.float32) * 0.2,
        "style_weight_b": jax.random.normal(k2, (input_nc,), jnp.float32) * 0.1,
        # nn.Conv2d(feat_ch, output_nc, 1) weights/bias
        "style_bias_w": jax.random.normal(k3, (output_nc, feat_ch, 1, 1), jnp.float32) * 0.2,
        "style_bias_b": jax.random.normal(k4, (output_nc,), jnp.float32) * 0.1,
        # self.weight: (1, output_nc, input_nc, k, k)
        "weight": jax.random.normal(k5, (1, output_nc, input_nc, kernel_size, kernel_size),
                                    jnp.float32),
    }

    x = jax.random.normal(k6, (n, input_nc, H, W), jnp.float32)
    style = jax.random.normal(k7, (n, feat_ch, 1, 1), jnp.float32)

    ref = modulated_style_conv_ref(x, style, params, kernel_size=kernel_size,
                                   demodulate=demodulate, activate=activate)
    ref = jax.block_until_ready(ref)

    # f32 MXU path (tighter check of the math / layout).
    out_f32 = modulated_style_conv(x, style, params, kernel_size=kernel_size,
                                   demodulate=demodulate, activate=activate,
                                   matmul_dtype=jnp.float32)
    out_f32 = jax.block_until_ready(out_f32)
    assert out_f32.shape == (n, output_nc, H, W), out_f32.shape
    assert jnp.allclose(out_f32, ref, atol=1e-3, rtol=1e-3), \
        float(jnp.max(jnp.abs(out_f32 - ref)))

    # bf16 MXU path (production setting; looser tolerance per bf16 operand rounding).
    out_bf16 = modulated_style_conv(x, style, params, kernel_size=kernel_size,
                                    demodulate=demodulate, activate=activate,
                                    matmul_dtype=jnp.bfloat16)
    out_bf16 = jax.block_until_ready(out_bf16)
    assert out_bf16.shape == (n, output_nc, H, W), out_bf16.shape
    assert jnp.allclose(out_bf16, ref, atol=5e-2, rtol=5e-2), \
        float(jnp.max(jnp.abs(out_bf16 - ref)))

    print("KERNEL_OK")
</pallas_src>

<mosaic_0001>
module attributes {stable_mosaic.version = 11 : i64} {
  func.func @_mod_conv_kernel(%arg0: i32, %arg1: i32, %arg2: memref<1x36x256xf32, #tpu.memory_space<vmem>>, %arg3: memref<8x36xf32, #tpu.memory_space<vmem>>, %arg4: memref<1x8x1xf32, #tpu.memory_space<vmem>>, %arg5: memref<1x8x1xf32, #tpu.memory_space<vmem>>, %arg6: memref<1x8x256xf32, #tpu.memory_space<vmem>>) attributes {dimension_semantics = [#tpu.dimension_semantics<parallel>, #tpu.dimension_semantics<parallel>], iteration_bounds = array<i64: 2, 1>, scalar_prefetch = 0 : i64, scratch_operands = 0 : i64, tpu.core_type = #tpu.core_type<tc>, window_params = [{transform_indices = @transform_0, window_bounds = array<i64: 1, 36, 256>}, {pipeline_mode = #tpu.pipeline_mode<synchronous>, transform_indices = @transform_1, window_bounds = array<i64: 8, 36>}, {transform_indices = @transform_2, window_bounds = array<i64: 1, 8, 1>}, {transform_indices = @transform_3, window_bounds = array<i64: 1, 8, 1>}, {transform_indices = @transform_4, window_bounds = array<i64: 1, 8, 256>}]} {
    %c0 = arith.constant 0 : index
    %c0_0 = arith.constant 0 : index
    %0 = vector.load %arg3[%c0, %c0_0] : memref<8x36xf32, #tpu.memory_space<vmem>>, vector<8x36xf32>
    %c0_1 = arith.constant 0 : index
    %c0_2 = arith.constant 0 : index
    %c0_3 = arith.constant 0 : index
    %1 = vector.load %arg2[%c0_1, %c0_2, %c0_3] : memref<1x36x256xf32, #tpu.memory_space<vmem>>, vector<1x36x256xf32>
    %2 = vector.shape_cast %1 : vector<1x36x256xf32> to vector<36x256xf32>
    %cst = arith.constant dense<0.000000e+00> : vector<8x256xf32>
    %3 = tpu.matmul %0, %2, %cst {dimension_numbers = #tpu.dot_dimension_numbers<[1], [0], [0], [1], [0, 0, 1, 1], [], []>} : vector<8x36xf32>, vector<36x256xf32>, vector<8x256xf32> -> vector<8x256xf32>
    %c0_4 = arith.constant 0 : index
    %c0_5 = arith.constant 0 : index
    %c0_6 = arith.constant 0 : index
    %4 = vector.load %arg4[%c0_4, %c0_5, %c0_6] : memref<1x8x1xf32, #tpu.memory_space<vmem>>, vector<1x8x1xf32>
    %5 = vector.shape_cast %4 : vector<1x8x1xf32> to vector<8x1xf32>
    %6 = vector.broadcast %5 : vector<8x1xf32> to vector<8x256xf32>
    %7 = arith.mulf %3, %6 : vector<8x256xf32>
    %c0_7 = arith.constant 0 : index
    %c0_8 = arith.constant 0 : index
    %c0_9 = arith.constant 0 : index
    %8 = vector.load %arg5[%c0_7, %c0_8, %c0_9] : memref<1x8x1xf32, #tpu.memory_space<vmem>>, vector<1x8x1xf32>
    %9 = vector.shape_cast %8 : vector<1x8x1xf32> to vector<8x1xf32>
    %10 = vector.broadcast %9 : vector<8x1xf32> to vector<8x256xf32>
    %11 = arith.addf %7, %10 : vector<8x256xf32>
    %cst_10 = arith.constant 2.000000e-01 : f32
    %12 = vector.broadcast %cst_10 : f32 to vector<8x256xf32>
    %13 = arith.mulf %12, %11 : vector<8x256xf32>
    %14 = arith.maximumf %11, %13 : vector<8x256xf32>
    %c0_11 = arith.constant 0 : index
    %c0_12 = arith.constant 0 : index
    %c0_13 = arith.constant 0 : index
    %15 = vector.load %arg6[%c0_11, %c0_12, %c0_13] : memref<1x8x256xf32, #tpu.memory_space<vmem>>, vector<1x8x256xf32>
    %16 = vector.shape_cast %15 : vector<1x8x256xf32> to vector<8x256xf32>
    %17 = vector.shape_cast %14 : vector<8x256xf32> to vector<1x8x256xf32>
    tpu.vector_store %arg6[%c0_11, %c0_12, %c0_13], %17 {strides = array<i32>} : memref<1x8x256xf32, #tpu.memory_space<vmem>>, vector<1x8x256xf32>,
    return
  }
  func.func @transform_0(%arg0: i32, %arg1: i32) -> (i32, i32, i32) {
    %c0_i32 = arith.constant 0 : i32
    %c0_i32_0 = arith.constant 0 : i32
    return %arg0, %c0_i32, %arg1 : i32, i32, i32
  }
  func.func @transform_1(%arg0: i32, %arg1: i32) -> (i32, i32) {
    %c0_i32 = arith.constant 0 : i32
    %c0_i32_0 = arith.constant 0 : i32
    %c0_i32_1 = arith.constant 0 : i32
    return %c0_i32, %c0_i32_0 : i32, i32
  }
  func.func @transform_2(%arg0: i32, %arg1: i32) -> (i32, i32, i32) {
    %c0_i32 = arith.constant 0 : i32
    %c0_i32_0 = arith.constant 0 : i32
    %c0_i32_1 = arith.constant 0 : i32
    return %arg0, %c0_i32, %c0_i32_0 : i32, i32, i32
  }
  func.func @transform_3(%arg0: i32, %arg1: i32) -> (i32, i32, i32) {
    %c0_i32 = arith.constant 0 : i32
    %c0_i32_0 = arith.constant 0 : i32
    %c0_i32_1 = arith.constant 0 : i32
    return %arg0, %c0_i32, %c0_i32_0 : i32, i32, i32
  }
  func.func @transform_4(%arg0: i32, %arg1: i32) -> (i32, i32, i32) {
    %c0_i32 = arith.constant 0 : i32
    %c0_i32_0 = arith.constant 0 : i32
    return %arg0, %c0_i32, %arg1 : i32, i32, i32
  }
}

</mosaic_0001>

<llo_original>
// kernel: tpu_custom_call.1
$region0: #{tpu_custom_call.1}
  #allocation0 [shape = 'u32[]', space=smem, size = 0x4, offset = 0x4, fixed_abs, tag = 'smem constant byte address 0x4 - core index']
  #allocation1 [shape = 'u32[72,128]{1,0:T(1,128)}', space=vmem, size = 0x9000, scoped, tag = 'internal scratch']
  %s0 = inlined_call_operand.vmem [shape: f32[2,36,256], index: 0, kind: input, shape index: {}]
  %s1 = inlined_call_operand.vmem [shape: f32[8,36], index: 1, kind: input, shape index: {}]
  %s2 = inlined_call_operand.vmem [shape: f32[2,8,1], index: 2, kind: input, shape index: {}]
  %s3 = inlined_call_operand.vmem [shape: f32[2,8,1], index: 3, kind: input, shape index: {}]
  %s4 = inlined_call_operand.hbm [shape: f32[2,8,256], index: 4, kind: output, shape index: {}]
  %s5 = sld [smem:[#allocation0]]
  $region49: #{tpu_custom_call.1} parent=0
    _
  %s7 = ssub.s32 1, %s5
  %s8 = scalar_select 0, %s7, %s5
  $region1: #{tpu_custom_call.1} parent=0
    #allocation2 [shape = 'u8[16384]{0}', space=vmem, size = 0x4000, scoped, tag = 'output window, operand 0']
    #allocation3 [shape = 's32[2]{0}', space=sflag, size = 0x8, scoped, tag = 'scoped memory for tpu_custom_call.1']
    %9 = vsyncpa [#allocation3], 0
    %s10 = scalar_lea.sflag [#allocation3], 1
    %11 = vsyncpa %s10, 0
    loop: start=0, step=1, limit=4
    $region2: #{tpu_custom_call.1} parent=1 // loop_pre_header
      _
    $region3: #{tpu_custom_call.1} parent=1 // loop_header
      %s13 = sphi 0, %s17
      %p14 = scmp.ge.s32.totalorder %s13, 4
      %s20 = sphi 0, %s32
      %s21 = sphi 0, %s28
      %s22 = sphi 0, %s20
      %s23 = sphi 0, %s21
      %s24 = sphi 0, %s22
      %s25 = sphi 0, %s23
      %s37 = sphi 0, %s39
      %s40 = sphi 0, %s37
      %s41 = sphi 0, %s40
      %s57 = sphi 0, %s41
      %s61 = sphi 0, %s61
      %s63 = sphi 0, %s61
      %s64 = sphi 0, %s63
      %s78 = sphi 0, %s64
      %s84 = sphi 0, %s86
      %s87 = sphi 0, %s84
      %s88 = sphi 0, %s87
      %s104 = sphi 0, %s88
      %s110 = sphi 0, %s112
      %s113 = sphi 0, %s110
      %s114 = sphi 0, %s113
      %s130 = sphi 0, %s114
      %s138 = sphi 0, %s140
      %s141 = sphi 0, %s138
      %s142 = sphi 0, %s141
      %s158 = sphi 0, %s142
    $region4: #{tpu_custom_call.1} parent=1 // loop_header_branch
      %16 = sbr.rel (%p14) target = $region8
    $region5: #{tpu_custom_call.1} parent=1 // loop_body
      %s18 = ssub.s32 %s13, 1
      %s19 = ssub.s32 %s13, 2
      %s26 = sadd.s32 1, %s21
      %p27 = scmp.ge.s32.totalorder %s26, 1
      %s28 = scalar_select %p27, 0, %s26
      %s29 = sadd.s32 1, %s20
      %s30 = scalar_select %p27, %s29, %s20
      %p31 = scmp.ge.s32.totalorder %s30, 2
      %s32 = scalar_select %p31, 0, %s30
      %s33 = ssub.s32 %s20, %s32
      %s34 = ssub.s32 %s21, %s28
      %s35 = sor.u32 %s33, %s34
      %p36 = scmp.eq.s32.totalorder %s35, 0
      %s38 = sadd.s32 %s37, 1
      %s39 = scalar_select %p36, %s37, %s38
      %p42 = pneg %p36
      %p43 = scmp.eq.s32.totalorder %s13, 1
      %p44 = por %p42, %p43
      %p45 = scmp.ne.s32.totalorder %s37, %s40
      %p46 = scmp.eq.s32.totalorder %s13, 0
      %p47 = por %p45, %p46
      %p48 = scmp.ne.s32.totalorder %s37, %s40
      %p49 = scmp.eq.s32.totalorder %s18, 1
      %p50 = por %p48, %p49
      %p51 = scmp.ne.s32.totalorder %s40, %s41
      %p52 = scmp.eq.s32.totalorder %s18, 0
      %p53 = por %p51, %p52
      %p54 = scmp.ne.s32.totalorder %s40, %s41
      %p55 = scmp.eq.s32.totalorder %s19, 1
      %p56 = por %p54, %p55
      %p58 = scmp.ne.s32.totalorder %s41, %s57
      %p59 = scmp.eq.s32.totalorder %s19, 0
      %p60 = por %p58, %p59
      %s62 = sadd.s32 %s61, 1
      %p65 = scmp.eq.s32.totalorder %s13, 1
      %p66 = scmp.ne.s32.totalorder %s61, %s63
      %p67 = scmp.eq.s32.totalorder %s13, 0
      %p68 = por %p66, %p67
      %p69 = scmp.ne.s32.totalorder %s61, %s63
      %p70 = scmp.eq.s32.totalorder %s18, 1
      %p71 = por %p69, %p70
      %p72 = scmp.ne.s32.totalorder %s63, %s64
      %p73 = scmp.eq.s32.totalorder %s18, 0
      %p74 = por %p72, %p73
      %p75 = scmp.ne.s32.totalorder %s63, %s64
      %p76 = scmp.eq.s32.totalorder %s19, 1
      %p77 = por %p75, %p76
      %p79 = scmp.ne.s32.totalorder %s64, %s78
      %p80 = scmp.eq.s32.totalorder %s19, 0
      %p81 = por %p79, %p80
      %s82 = ssub.s32 %s20, %s32
      %p83 = scmp.eq.s32.totalorder %s82, 0
      %s85 = sadd.s32 %s84, 1
      %s86 = scalar_select %p83, %s84, %s85
      %p89 = pneg %p83
      %p90 = scmp.eq.s32.totalorder %s13, 1
      %p91 = por %p89, %p90
      %p92 = scmp.ne.s32.totalorder %s84, %s87
      %p93 = scmp.eq.s32.totalorder %s13, 0
      %p94 = por %p92, %p93
      %p95 = scmp.ne.s32.totalorder %s84, %s87
      %p96 = scmp.eq.s32.totalorder %s18, 1
      %p97 = por %p95, %p96
      %p98 = scmp.ne.s32.totalorder %s87, %s88
      %p99 = scmp.eq.s32.totalorder %s18, 0
      %p100 = por %p98, %p99
      %p101 = scmp.ne.s32.totalorder %s87, %s88
      %p102 = scmp.eq.s32.totalorder %s19, 1
      %p103 = por %p101, %p102
      %p105 = scmp.ne.s32.totalorder %s88, %s104
      %p106 = scmp.eq.s32.totalorder %s19, 0
      %p107 = por %p105, %p106
      %s108 = ssub.s32 %s20, %s32
      %p109 = scmp.eq.s32.totalorder %s108, 0
      %s111 = sadd.s32 %s110, 1
      %s112 = scalar_select %p109, %s110, %s111
      %p115 = pneg %p109
      %p116 = scmp.eq.s32.totalorder %s13, 1
      %p117 = por %p115, %p116
      %p118 = scmp.ne.s32.totalorder %s110, %s113
      %p119 = scmp.eq.s32.totalorder %s13, 0
      %p120 = por %p118, %p119
      %p121 = scmp.ne.s32.totalorder %s110, %s113
      %p122 = scmp.eq.s32.totalorder %s18, 1
      %p123 = por %p121, %p122
      %p124 = scmp.ne.s32.totalorder %s113, %s114
      %p125 = scmp.eq.s32.totalorder %s18, 0
      %p126 = por %p124, %p125
      %p127 = scmp.ne.s32.totalorder %s113, %s114
      %p128 = scmp.eq.s32.totalorder %s19, 1
      %p129 = por %p127, %p128
      %p131 = scmp.ne.s32.totalorder %s114, %s130
      %p132 = scmp.eq.s32.totalorder %s19, 0
      %p133 = por %p131, %p132
      %s134 = ssub.s32 %s20, %s32
      %s135 = ssub.s32 %s21, %s28
      %s136 = sor.u32 %s134, %s135
      %p137 = scmp.eq.s32.totalorder %s136, 0
      %s139 = sadd.s32 %s138, 1
      %s140 = scalar_select %p137, %s138, %s139
      %p143 = pneg %p137
      %p144 = scmp.eq.s32.totalorder %s13, 1
      %p145 = por %p143, %p144
      %p146 = scmp.ne.s32.totalorder %s138, %s141
      %p147 = scmp.eq.s32.totalorder %s13, 0
      %p148 = por %p146, %p147
      %p149 = scmp.ne.s32.totalorder %s138, %s141
      %p150 = scmp.eq.s32.totalorder %s18, 1
      %p151 = por %p149, %p150
      %p152 = scmp.ne.s32.totalorder %s141, %s142
      %p153 = scmp.eq.s32.totalorder %s18, 0
      %p154 = por %p152, %p153
      %p155 = scmp.ne.s32.totalorder %s141, %s142
      %p156 = scmp.eq.s32.totalorder %s19, 1
      %p157 = por %p155, %p156
      %p159 = scmp.ne.s32.totalorder %s142, %s158
      %p160 = scmp.eq.s32.totalorder %s19, 0
      %p161 = por %p159, %p160
      %p162 = scmp.le.s32.totalorder 1, %s13
      %p163 = scmp.lt.s32.totalorder %s13, 3
      %p164 = pnand %p162, %p163
      %p165 = pneg %p164
      // Predicated region
      $region9: #{tpu_custom_call.1} parent=5 // pred_check
        _
      $region10: #{tpu_custom_call.1} parent=5 // pred_check_branch
        %167 = sbr.rel (%p164) target = $region12
      $region11: #{tpu_custom_call.1} parent=5 // pred_region
        %s168 = ssub.s32 %s13, 1
        // Predicated region
        $region13: #{tpu_custom_call.1} parent=11 // pred_check
          %p169 = pneg %p74
        $region14: #{tpu_custom_call.1} parent=11 // pred_check_branch
          %171 = sbr.rel (%p169) target = $region16
        $region15: #{tpu_custom_call.1} parent=11 // pred_region
          _
        $region16: #{tpu_custom_call.1} parent=11 // pred_fallthru
          _
      $region12: #{tpu_custom_call.1} parent=5 // pred_fallthru
        _
      %p172 = scmp.lt.s32.totalorder %s13, 2
      // Predicated region
      $region17: #{tpu_custom_call.1} parent=5 // pred_check
        %p173 = pneg %p172
      $region18: #{tpu_custom_call.1} parent=5 // pred_check_branch
        %175 = sbr.rel (%p173) target = $region20
      $region19: #{tpu_custom_call.1} parent=5 // pred_region
        // Predicated region
        $region21: #{tpu_custom_call.1} parent=19 // pred_check
          %p176 = pneg %p47
        $region22: #{tpu_custom_call.1} parent=19 // pred_check_branch
          %178 = sbr.rel (%p176) target = $region24
        $region23: #{tpu_custom_call.1} parent=19 // pred_region
          %s179 = smul.u32 2, %s21
          %p180 = scmp.lt.s32.totalorder %s20, 1
          %s181 = scalar_select %p180, %s20, 1
          %p182 = scmp.lt.s32.totalorder %s179, 1
          %s183 = scalar_select %p182, %s179, 1
          %s184 = smul.addr %s181, 10
          %s185 = sadd.s32 %s183, %s184
          %s186 = smul.addr %s185, 8
          %s187 = scalar_lea.vmem %s0, %s186
          %s188 = smul.u32 2, %s21
        $region24: #{tpu_custom_call.1} parent=19 // pred_fallthru
          _
        // Predicated region
        $region25: #{tpu_custom_call.1} parent=19 // pred_check
          %p189 = pneg %p94
        $region26: #{tpu_custom_call.1} parent=19 // pred_check_branch
          %191 = sbr.rel (%p189) target = $region28
        $region27: #{tpu_custom_call.1} parent=19 // pred_region
          %p192 = scmp.lt.s32.totalorder %s20, 1
          %s193 = scalar_select %p192, %s20, 1
          %s194 = smul.addr %s193, 8
          %s195 = scalar_lea.vmem %s2, %s194
        $region28: #{tpu_custom_call.1} parent=19 // pred_fallthru
          _
        // Predicated region
        $region29: #{tpu_custom_call.1} parent=19 // pred_check
          %p196 = pneg %p120
        $region30: #{tpu_custom_call.1} parent=19 // pred_check_branch
          %198 = sbr.rel (%p196) target = $region32
        $region31: #{tpu_custom_call.1} parent=19 // pred_region
          %p199 = scmp.lt.s32.totalorder %s20, 1
          %s200 = scalar_select %p199, %s20, 1
          %s201 = smul.addr %s200, 8
          %s202 = scalar_lea.vmem %s3, %s201
        $region32: #{tpu_custom_call.1} parent=19 // pred_fallthru
          _
      $region20: #{tpu_custom_call.1} parent=5 // pred_fallthru
        _
      %p203 = scmp.le.s32.totalorder 1, %s13
      %p204 = scmp.lt.s32.totalorder %s13, 3
      %p205 = pnand %p203, %p204
      %p206 = pneg %p205
      // Predicated region
      $region33: #{tpu_custom_call.1} parent=5 // pred_check
        _
      $region34: #{tpu_custom_call.1} parent=5 // pred_check_branch
        %208 = sbr.rel (%p205) target = $region36
      $region35: #{tpu_custom_call.1} parent=5 // pred_region
        %s209 = ssub.s32 %s13, 1
        %s210 = smul.u32 2, %s23
        %p211 = scmp.lt.s32.totalorder %s22, 1
        %s212 = scalar_select %p211, %s22, 1
        %p213 = scmp.lt.s32.totalorder %s210, 1
        %s214 = scalar_select %p213, %s210, 1
        %s215 = smul.addr %s212, 10
        %s216 = sadd.s32 %s214, %s215
        %s217 = smul.addr %s216, 8
        %s218 = scalar_lea.vmem %s0, %s217
        %p219 = pneg %p53
        %p220 = pneg %p50
        %p221 = pneg %p74
        %p222 = pneg %p71
        %p223 = scmp.lt.s32.totalorder %s22, 1
        %s224 = scalar_select %p223, %s22, 1
        %s225 = smul.addr %s224, 8
        %s226 = scalar_lea.vmem %s2, %s225
        %p227 = pneg %p100
        %p228 = pneg %p97
        %p229 = scmp.lt.s32.totalorder %s22, 1
        %s230 = scalar_select %p229, %s22, 1
        %s231 = smul.addr %s230, 8
        %s232 = scalar_lea.vmem %s3, %s231
        %p233 = pneg %p126
        %p234 = pneg %p123
        %p235 = pneg %p154
        %p236 = pneg %p151
        %s237 = sand.u32 %s141, 1
        %s238 = scalar_lea.sflag [#allocation3], %s237
        %s239 = sand.u32 %s141, 1
        %s240 = smul.addr %s239, 16
        %s241 = scalar_lea.vmem [#allocation2], %s240
        %s242 = smul.u32 2, %s23
        %p243 = scmp.lt.s32.totalorder %s22, 1
        %s244 = scalar_select %p243, %s22, 1
        %p245 = scmp.lt.s32.totalorder %s242, 1
        %s246 = scalar_select %p245, %s242, 1
        %s247 = smul.addr %s244, 10
        %s248 = sadd.s32 %s246, %s247
        %s249 = smul.addr %s248, 8
        %s250 = scalar_lea.vmem %s0, %s249
        %s251 = smul.u32 2, %s23
        %p252 = scmp.lt.s32.totalorder %s22, 1
        %s253 = scalar_select %p252, %s22, 1
        %s254 = smul.addr %s253, 8
        %s255 = scalar_lea.vmem %s2, %s254
        %p256 = scmp.lt.s32.totalorder %s22, 1
        %s257 = scalar_select %p256, %s22, 1
        %s258 = smul.addr %s257, 8
        %s259 = scalar_lea.vmem %s3, %s258
        %s260 = smul.u32 2, %s23
        %v261 = vld [vmem:[%s1] sm:$0xff]
        %v262 = vld [vmem:[%s250] sm:$0xff]
        %v263 = vld [vmem:[%s250 + $0x8] sm:$0xff]
        %v264 = vld [vmem:[%s250 + $0x10] sm:$0xff]
        %v265 = vld [vmem:[%s250 + $0x18] sm:$0xff]
        %v266 = vld [vmem:[%s250 + $0x20] sm:$0xff]
        %v267 = vld [vmem:[%s250 + $0x28] sm:$0xff]
        %v268 = vld [vmem:[%s250 + $0x30] sm:$0xff]
        %v269 = vld [vmem:[%s250 + $0x38] sm:$0xff]
        %v270 = vld [vmem:[%s250 + $0x40] sm:$0xf]
        %v271 = vld [vmem:[%s250 + $0x48] sm:$0xf]
        %vm272 = vcmask 293888
        %v274 = vsel %vm272, %v261, 0
        %vm276 = vcmask 1043456
        %v278 = vsel %vm276, %v270, 0
        %v281 = vsel %vm276, %v271, 0
        %283 = vmatpush.msra.mxu0 0.0
        %284 = vmatpush.msra.mxu0 0.0
        %285 = vmatpush.msra.mxu0 0.0
        %286 = vmatpush.msra.mxu0 0.0
        %287 = vmatpush.msra.mxu0 0.0
        %288 = vmatpush.msra.mxu0 0.0
        %289 = vmatpush.msra.mxu0 0.0
        %290 = vmatpush.msra.mxu0 0.0
        %291 = vmatpush.msra.mxu0 0.0
        %292 = vmatpush.msra.mxu0 0.0
        %293 = vmatpush.msra.mxu0 0.0
        %294 = vmatpush.msra.mxu0 %v278
        %295 = vmatpush.msra.mxu0 %v268
        %296 = vmatpush.msra.mxu0 %v266
        %297 = vmatpush.msra.mxu0 %v264
        %298 = vmatpush.msra.mxu0 %v262
        %299 = vmatmul.f32.gmra.mxu0 %v274
        %v300 = vpop.f32.mrf.mxu0
        %v301 = vadd.f32 0.0, %v300
        %302 = vdwg.mxu0
        %303 = vmatpush.msra.mxu0 0.0
        %304 = vmatpush.msra.mxu0 0.0
        %305 = vmatpush.msra.mxu0 0.0
        %306 = vmatpush.msra.mxu0 0.0
        %307 = vmatpush.msra.mxu0 0.0
        %308 = vmatpush.msra.mxu0 0.0
        %309 = vmatpush.msra.mxu0 0.0
        %310 = vmatpush.msra.mxu0 0.0
        %311 = vmatpush.msra.mxu0 0.0
        %312 = vmatpush.msra.mxu0 0.0
        %313 = vmatpush.msra.mxu0 0.0
        %314 = vmatpush.msra.mxu0 %v281
        %315 = vmatpush.msra.mxu0 %v269
        %316 = vmatpush.msra.mxu0 %v267
        %317 = vmatpush.msra.mxu0 %v265
        %318 = vmatpush.msra.mxu0 %v263
        %319 = vmatmul.f32.gmra.mxu0 %v274
        %v320 = vpop.f32.mrf.mxu0
        %v321 = vadd.f32 0.0, %v320
        %322 = vdwg.mxu0
        %v323 = vld [vmem:[%s255] sm:$0xff]
        %325 = vset.pattern.permute.xlu0 0
        %326 = vperm.xlu0 %325, %v323
        %v327 = vpop.permute.xlu0 %326
        %v329 = vmul.f32 %v301, %v327
        %v330 = vmul.f32 %v321, %v327
        %v331 = vld [vmem:[%s259] sm:$0xff]
        %333 = vset.pattern.permute.xlu0 0
        %334 = vperm.xlu0 %333, %v331
        %v335 = vpop.permute.xlu0 %334
        %v337 = vadd.f32 %v329, %v335
        %v338 = vadd.f32 %v330, %v335
        %v339 = vmul.f32 %v337, 0.2
        %v340 = vmul.f32 %v338, 0.2
        %v341 = vmax.f32 %v337, %v339
        %v342 = vmax.f32 %v338, %v340
        %343 = vst [vmem:[%s241] sm:$0xff] %v341
        %344 = vst [vmem:[%s241 + $0x8] sm:$0xff] %v342
        %s345 = sand.u32 %s141, 1
        %s346 = scalar_lea.sflag [#allocation3], %s345
        %s347 = sand.u32 %s141, 1
        %s348 = smul.addr %s347, 16
        %s349 = scalar_lea.vmem [#allocation2], %s348
        // Predicated region
        $region37: #{tpu_custom_call.1} parent=35 // pred_check
          %p350 = pneg %p151
        $region38: #{tpu_custom_call.1} parent=35 // pred_check_branch
          %352 = sbr.rel (%p350) target = $region40
        $region39: #{tpu_custom_call.1} parent=35 // pred_region
          %s353 = smul.u32 2, %s23
          %355 = vsyncadd %s346, 0
          %s356 = smul.addr %s22, 2
          %s357 = sadd.s32 %s353, %s356
          %s358 = smul.addr %s357, 8
          %s359 = scalar_lea.hbm %s4, %s358
          %s361 = sshll.u32 %s349, 4
          %s362 = int_to_ptr.vmem [resolvable:$true] %s361
          %s363 = sshll.u32 %s359, 4
          %s364 = int_to_ptr.hbm [resolvable:$true] %s363
          %366 = dma.vmem_to_hbm [thread:$0]  %s362, 256, %s364, %s346
        $region40: #{tpu_custom_call.1} parent=35 // pred_fallthru
          _
      $region36: #{tpu_custom_call.1} parent=5 // pred_fallthru
        _
      %p367 = scmp.le.s32.totalorder 2, %s13
      // Predicated region
      $region41: #{tpu_custom_call.1} parent=5 // pred_check
        %p368 = pneg %p367
      $region42: #{tpu_custom_call.1} parent=5 // pred_check_branch
        %370 = sbr.rel (%p368) target = $region44
      $region43: #{tpu_custom_call.1} parent=5 // pred_region
        %s371 = ssub.s32 %s13, 2
        // Predicated region
        $region45: #{tpu_custom_call.1} parent=43 // pred_check
          %p372 = pneg %p157
        $region46: #{tpu_custom_call.1} parent=43 // pred_check_branch
          %374 = sbr.rel (%p372) target = $region48
        $region47: #{tpu_custom_call.1} parent=43 // pred_region
          %s375 = sand.u32 %s142, 1
          %s376 = scalar_lea.sflag [#allocation3], %s375
          %s377 = sand.u32 %s142, 1
          %s378 = smul.addr %s377, 16
          %s379 = scalar_lea.vmem [#allocation2], %s378
          %381 = dma.done %s376, 256
        $region48: #{tpu_custom_call.1} parent=43 // pred_fallthru
          _
      $region44: #{tpu_custom_call.1} parent=5 // pred_fallthru
        _
    $region6: #{tpu_custom_call.1} parent=1 // loop_footer
      %s17 = sadd.s32 1, %s13
    $region7: #{tpu_custom_call.1} parent=1 // loop_footer_branch
      %12 = sbr.rel target = $region3
    $region8: #{tpu_custom_call.1} parent=1 // loop_exit
      _
    %382 = vsyncpa [#allocation3], 1
    %s383 = scalar_lea.sflag [#allocation3], 1
    %384 = vsyncpa %s383, 1

</llo_original>
